<compile_context>
chip_gen: v6e
topology: v6e:2x2x1
jax: 0.10.0
libtpu: 0.0.40
codegen_flags: <defaults>
</compile_context>

<pallas_src>
import jax
import jax.numpy as jnp
from jax.experimental import pallas as pl
from jax.experimental.pallas import tpu as pltpu

# ---------------- configuration (small, consistent with the module) ----------
NUM_USERS = 48
NUM_ITEMS = 80
N_NODES = NUM_USERS + NUM_ITEMS          # 128
EMB_DIM = 64
NUM_LAYERS = 3
FEAT_DIM = 32
NUM_EDGES = 300


# ---------------- fused Pallas kernel -----------------------------------------
def _fused_lightgcn_kernel(coef_ref, adj_ref, user_ref, item_ref, feat_ref,
                           wt_ref, b_ref, out_ref, x0_ref):
    # coef_ref : (2,) f32 SMEM  -> [c0, c1]  (c0 = sum w_l, c1 = sum l*w_l)
    # adj_ref  : (N, N) dense normalized adjacency, VMEM
    # user_ref : (num_users, D) user embeddings
    # item_ref : (num_items, D) item embeddings
    # feat_ref : (num_items, F) item features
    # wt_ref   : (F, D) projection weight transposed
    # b_ref    : (1, D) projection bias
    # out_ref  : (N, D) attention-weighted final embedding
    # x0_ref   : (N, D) VMEM scratch holding the concatenated initial embedding

    # item feature projection fused in: (num_items, F) @ (F, D) + b
    proj = jnp.dot(feat_ref[...], wt_ref[...],
                   preferred_element_type=jnp.float32) + b_ref[...]

    # build x0 = concat([user_emb, item_emb + proj]) directly in VMEM scratch
    # (NUM_USERS and NUM_ITEMS are multiples of 8 -> sublane-aligned writes).
    x0_ref[pl.ds(0, NUM_USERS), :] = user_ref[...]
    x0_ref[pl.ds(NUM_USERS, NUM_ITEMS), :] = item_ref[...] + proj

    e0 = x0_ref[...]
    # single MXU pass: p = A @ x0 (identical for every layer in the torch code)
    p = jnp.dot(adj_ref[...], e0, preferred_element_type=jnp.float32)

    # collapsed layer loop: final = c0*e0 + c1*p
    out_ref[...] = coef_ref[0] * e0 + coef_ref[1] * p


def enhanced_lightgcn_forward(adj, params, *, num_layers=NUM_LAYERS):
    """adj: (N, N) precomputed dense normalized adjacency (cached per graph)."""
    # attention = softmax over layer dim; collapse to two scalar coefficients.
    w = jax.nn.softmax(params["attention"], axis=0).reshape(-1)       # (L+1,)
    layer_idx = jnp.arange(num_layers + 1, dtype=jnp.float32)
    coefs = jnp.stack([jnp.sum(w), jnp.sum(w * layer_idx)])           # (2,)

    wt = params["proj_w"].T                                           # (F, D)
    b2 = params["proj_b"].reshape(1, -1)                              # (1, D)

    final = pl.pallas_call(
        _fused_lightgcn_kernel,
        out_shape=jax.ShapeDtypeStruct((N_NODES, EMB_DIM), jnp.float32),
        grid=(1,),
        in_specs=[
            pl.BlockSpec(memory_space=pltpu.MemorySpace.SMEM),        # coefs
            pl.BlockSpec((N_NODES, N_NODES), lambda i: (0, 0)),       # adjacency
            pl.BlockSpec((NUM_USERS, EMB_DIM), lambda i: (0, 0)),     # user emb
            pl.BlockSpec((NUM_ITEMS, EMB_DIM), lambda i: (0, 0)),     # item emb
            pl.BlockSpec((NUM_ITEMS, FEAT_DIM), lambda i: (0, 0)),    # item feats
            pl.BlockSpec((FEAT_DIM, EMB_DIM), lambda i: (0, 0)),      # W^T
            pl.BlockSpec((1, EMB_DIM), lambda i: (0, 0)),             # bias
        ],
        out_specs=pl.BlockSpec((N_NODES, EMB_DIM), lambda i: (0, 0)),
        scratch_shapes=[pltpu.VMEM((N_NODES, EMB_DIM), jnp.float32)],
    )(coefs, adj, params["user_emb"], params["item_emb"],
      params["item_features"], wt, b2)

    return final[:NUM_USERS], final[NUM_USERS:]


# ---------------- plain-JAX glue (hoisted out of the hot forward path) --------
@jax.jit
def build_normalized_adjacency(edge_index):
    """Dense version of PyG gcn_norm(add_self_loops=False) + add-aggregation.

    out[c] = sum_{edges (r,c)} deg(r)^-1/2 * deg(c)^-1/2 * x[r]
    Built ONCE per graph (edge_index is static) and cached/passed in.
    """
    row, col = edge_index[0], edge_index[1]
    ones = jnp.ones(row.shape[0], jnp.float32)
    deg = jnp.zeros((N_NODES,), jnp.float32).at[col].add(ones)
    deg_inv_sqrt = jnp.where(deg > 0, jax.lax.rsqrt(jnp.maximum(deg, 1e-12)), 0.0)
    norm = deg_inv_sqrt[row] * deg_inv_sqrt[col]
    adj = jnp.zeros((N_NODES, N_NODES), jnp.float32).at[col, row].add(norm)
    return adj


# ---------------- reference (pure JAX) for verification ------------------------
def reference_forward(adj, params):
    item_emb = params["item_emb"] + (
        params["item_features"] @ params["proj_w"].T + params["proj_b"])
    x0 = jnp.concatenate([params["user_emb"], item_emb], axis=0)
    embs = [x0]
    for _ in range(NUM_LAYERS):
        new = adj @ x0                 # all_emb never updated, matching torch code
        new = new + embs[-1]
        embs.append(new)
    stacked = jnp.stack(embs, axis=0)
    w = jax.nn.softmax(params["attention"], axis=0)
    final = (stacked * w).sum(axis=0)
    return final[:NUM_USERS], final[NUM_USERS:]


# ---------------- main ----------------------------------------------------------
if __name__ == "__main__":
    key = jax.random.PRNGKey(0)
    k_ue, k_ie, k_feat, k_w, k_b, k_src, k_dst = jax.random.split(key, 7)

    # Deterministic "parameter" init (Embedding ~ N(0,1); Linear ~ U(-1/sqrt(F), ..)).
    params = {
        "user_emb": jax.random.normal(k_ue, (NUM_USERS, EMB_DIM), jnp.float32),
        "item_emb": jax.random.normal(k_ie, (NUM_ITEMS, EMB_DIM), jnp.float32),
        "item_features": jax.random.normal(k_feat, (NUM_ITEMS, FEAT_DIM),
                                           jnp.float32),
        "proj_w": jax.random.uniform(k_w, (EMB_DIM, FEAT_DIM), jnp.float32,
                                     -1.0 / FEAT_DIM ** 0.5, 1.0 / FEAT_DIM ** 0.5),
        "proj_b": jax.random.uniform(k_b, (EMB_DIM,), jnp.float32,
                                     -1.0 / FEAT_DIM ** 0.5, 1.0 / FEAT_DIM ** 0.5),
        "attention": jnp.ones((NUM_LAYERS + 1, 1, 1), jnp.float32),
    }

    # Bipartite user<->item edges (both directions), node ids in [0, N).
    src_u = jax.random.randint(k_src, (NUM_EDGES,), 0, NUM_USERS)
    dst_i = jax.random.randint(k_dst, (NUM_EDGES,), NUM_USERS, N_NODES)
    edge_index = jnp.stack([
        jnp.concatenate([src_u, dst_i]),
        jnp.concatenate([dst_i, src_u]),
    ]).astype(jnp.int32)                                  # (2, 2*NUM_EDGES)

    # Adjacency is a per-graph constant: build it once, reuse for every forward.
    adj = build_normalized_adjacency(edge_index)
    jax.block_until_ready(adj)

    user_out, item_out = enhanced_lightgcn_forward(adj, params)
    jax.block_until_ready((user_out, item_out))

    ref_user, ref_item = reference_forward(adj, params)
    assert user_out.shape == (NUM_USERS, EMB_DIM)
    assert item_out.shape == (NUM_ITEMS, EMB_DIM)
    assert jnp.allclose(user_out, ref_user, atol=1e-4, rtol=1e-4)
    assert jnp.allclose(item_out, ref_item, atol=1e-4, rtol=1e-4)

    print("KERNEL_OK")
</pallas_src>

<mosaic_0001>
module attributes {stable_mosaic.version = 11 : i64} {
  func.func private @main(%arg0: i32) attributes {dimension_semantics = [#tpu.dimension_semantics<core_parallel>], iteration_bounds = array<i64: 2>, tpu.core_type = #tpu.core_type<sc_scalar_subcore>, window_params = []} {
    return
  }
}

module attributes {stable_mosaic.version = 11 : i64} {
  func.func private @main(%arg0: i32) attributes {dimension_semantics = [#tpu.dimension_semantics<core_parallel>], iteration_bounds = array<i64: 2>, tpu.core_type = #tpu.core_type<sc_scalar_subcore>, window_params = []} {
    return
  }
}

</mosaic_0001>

<llo_original>
// kernel: mul.1
$region0: #{mul.1}
  #allocation0 [shape = 's32[1]{0}', space=sflag, size = 0x4, scoped, tag = 'scoped memory for mul.1']
  %s0 = inlined_call_operand.vmem [shape: f32[600], index: 0, kind: input, shape index: {}]
  %s1 = inlined_call_operand.vmem [shape: f32[600], index: 1, kind: input, shape index: {}]
  %s2 = inlined_call_operand.vmem [shape: f32[600], index: 2, kind: output, shape index: {}]
  %v3 = vld [vmem:[%s0] sm:$0x1f]
  %v4 = vld [vmem:[%s1] sm:$0x1f]
  %5 = xla_tuple %v3, %v4
  %6 = xla_tuple %5
  %v7 = vmul.f32 %v3, %v4
  %8 = xla_tuple %v7
  %9 = vst [vmem:[%s2] sm:$0xff] %v7

</llo_original>
